<compile_context>
chip_gen: v7x
topology: tpu7x:2x2x1
jax: 0.10.0
libtpu: 0.0.40
codegen_flags: <defaults>
</compile_context>

<pallas_src>
import functools

import jax
import jax.numpy as jnp
from jax import lax
from jax.experimental import pallas as pl
from jax.experimental.pallas import tpu as pltpu


def _normalize_kernel(z_ref, zn_ref, *, scale):
    """Row-normalize one (rows, D) tile; fold sqrt(1/T): zn = scale * z / max(||z||, 1e-8)."""
    z = z_ref[...].astype(jnp.float32)
    ss = jnp.sum(z * z, axis=1, keepdims=True)
    # rsqrt(max(ss, 1e-16)) == 1 / max(||z||, 1e-8)  (torch cosine_similarity eps)
    zn = z * (lax.rsqrt(jnp.maximum(ss, 1e-16)) * scale)
    zn_ref[...] = zn.astype(zn_ref.dtype)


def _ntxent_kernel(zq_ref, zk_ref, zpos_ref, out_ref, acc_ref, *,
                   block_k, pad_count):
    """One (Q block, K block) step of the streamed NT-Xent denominator.

    Operands already carry sqrt(1/T), so zq . zk == sim / T directly.
    """
    k_idx = pl.program_id(1)

    @pl.when(k_idx == 0)
    def _init():
        acc_ref[...] = jnp.zeros_like(acc_ref)

    zq = zq_ref[...]
    # Contract last dims of both operands -> feeds the MXU from row-major tiles.
    sim = lax.dot_general(zq, zk_ref[...],
                          dimension_numbers=(((1,), (1,)), ((), ())),
                          preferred_element_type=jnp.float32)   # (bq, bk) == sim / T
    e = jnp.exp(sim)
    # TODO(synk): add running-max subtraction if temperatures < ~0.02 must be
    # supported (exp(1/T) overflows f32 for very small T).

    if block_k % 128 == 0:
        # Lane-dense accumulation: bulk adds stay on the VPU, the accumulator
        # store is a full-width unmasked vst, and the single cross-lane (XLU)
        # reduce happens once per Q sweep in _finalize.
        partial = e[:, 0:128]
        for j in range(1, block_k // 128):
            partial = partial + e[:, j * 128:(j + 1) * 128]
        acc_ref[...] += partial
    else:
        acc_ref[...] += jnp.sum(e, axis=1, keepdims=True)

    @pl.when(k_idx == pl.num_programs(1) - 1)
    def _finalize():
        zq32 = zq.astype(jnp.float32)
        zpos32 = zpos_ref[...].astype(jnp.float32)
        # Self-similarity term: exactly the diagonal contribution already
        # accumulated (replaces the old per-tile iota/where diagonal masking).
        self_term = jnp.exp(jnp.sum(zq32 * zq32, axis=1, keepdims=True))
        pos = jnp.sum(zq32 * zpos32, axis=1, keepdims=True)        # pos_sim / T
        denom = jnp.sum(acc_ref[...], axis=1, keepdims=True)
        denom = denom - self_term - pad_count                      # drop pad columns
        # -log(exp(pos/T) / denom) == log(denom) - pos/T
        out_ref[...] = jnp.log(denom) - pos


def _largest_divisor(n, limit, align):
    """Largest multiple of `align` that divides `n` and is <= limit (None if none)."""
    best = None
    for c in range(align, min(n, limit) + 1, align):
        if n % c == 0:
            best = c
    return best


def _pick_norm_rows(two_n, d, align):
    # Pass 1 is purely HBM-bound: use big row tiles (HBM roofline ~85% at
    # 512-2048 rows) while keeping the double-buffered in/out tiles modest.
    limit = min(2048, max(align, ((6 << 20) // (4 * d)) // align * align))
    return _largest_divisor(two_n, limit, align) or two_n


def _pick_blocks(n_pad, two_n, d, align):
    """Jointly pick (block_q, block_k) under a conservative VMEM budget."""
    budget = 36 << 20        # headroom under v7x's 64 MiB physical VMEM
    bq_t, bk_t = 512, 2048   # bigger tiles cut zn re-reads + per-step overhead
    while True:
        bq = _largest_divisor(n_pad, bq_t, align) or n_pad
        bk = (_largest_divisor(two_n, bk_t, 128)          # MXU-friendly lanes
              or _largest_divisor(two_n, bk_t, align)
              or two_n)
        est = 4 * (2 * (2 * bq + bk) * d + 3 * bq * bk + 132 * bq)
        if est <= budget or (bq_t <= 64 and bk_t <= 256):
            return bq, bk
        if bq_t > 64:
            bq_t //= 2
        if bk_t > 256:
            bk_t //= 2


def ntxent_loss(z_i, z_j, temperature=1.0, *, block_q=None, block_k=None,
                store_bf16=False):
    """NT-Xent loss. z_i, z_j: (N, D) arrays. Returns scalar float32 loss."""
    assert z_i.shape == z_j.shape and z_i.ndim == 2
    n, d = z_i.shape

    # Pad each view's batch to the sublane alignment (16 for bf16 storage) so
    # every row block satisfies the (8, 128) tiling rule.  Padded rows are
    # exact zeros: they normalize to zero, contribute exp(0) == 1 per padded
    # column to every denominator (constant subtracted inside the kernel) and
    # are dropped before the final mean.
    align = 16 if store_bf16 else 8
    n_pad = -(-n // align) * align
    pad = n_pad - n
    z_i32 = z_i.astype(jnp.float32)
    z_j32 = z_j.astype(jnp.float32)
    if pad:
        zeros = jnp.zeros((pad, d), jnp.float32)
        z_i32 = jnp.concatenate([z_i32, zeros], axis=0)
        z_j32 = jnp.concatenate([z_j32, zeros], axis=0)
    z = jnp.concatenate([z_i32, z_j32], axis=0)            # (2*n_pad, D)
    two_n = 2 * n_pad

    if block_q is None or block_k is None:
        bq_auto, bk_auto = _pick_blocks(n_pad, two_n, d, align)
        block_q = bq_auto if block_q is None else block_q
        block_k = bk_auto if block_k is None else block_k
    assert n_pad % block_q == 0, "block_q must divide the (padded) batch size"
    assert two_n % block_k == 0, "block_k must divide 2 * (padded) batch size"
    num_qb = two_n // block_q       # even by construction => both v7x TCs busy
    num_kb = two_n // block_k
    n_shift = n_pad // block_q      # partner-block offset: (r + N) mod 2N
    acc_cols = 128 if block_k % 128 == 0 else 1
    zn_dtype = jnp.bfloat16 if store_bf16 else jnp.float32

    # ------------- pass 1: row-normalize, fold in sqrt(1/T) ----------------
    scale = float(1.0 / float(temperature)) ** 0.5
    norm_rows = _pick_norm_rows(two_n, d, align)
    norm_vmem = int(min(max(4 * norm_rows * d * 4 + (4 << 20), 16 << 20), 48 << 20))
    zn = pl.pallas_call(
        functools.partial(_normalize_kernel, scale=scale),
        out_shape=jax.ShapeDtypeStruct((two_n, d), zn_dtype),
        grid=(two_n // norm_rows,),
        in_specs=[pl.BlockSpec((norm_rows, d), lambda i: (i, 0))],
        out_specs=pl.BlockSpec((norm_rows, d), lambda i: (i, 0)),
        compiler_params=pltpu.CompilerParams(
            dimension_semantics=("parallel",),
            vmem_limit_bytes=norm_vmem),
    )(z)

    # ------------- pass 2: stream the similarity matrix --------------------
    kernel = functools.partial(_ntxent_kernel, block_k=block_k,
                               pad_count=float(2 * pad))
    elt = 2 if store_bf16 else 4
    p2_bytes = (2 * elt * (2 * block_q + block_k) * d    # double-buffered tiles
                + 4 * 3 * block_q * block_k              # sim / exp / partial temporaries
                + 4 * block_q * (acc_cols + 4))          # accumulator + output
    vmem_limit = int(min(max(p2_bytes + (4 << 20), 16 << 20), 48 << 20))

    losses = pl.pallas_call(
        kernel,
        out_shape=jax.ShapeDtypeStruct((two_n, 1), jnp.float32),
        grid_spec=pltpu.PrefetchScalarGridSpec(
            num_scalar_prefetch=0,
            grid=(num_qb, num_kb),                        # K (reduction) axis last
            in_specs=[
                pl.BlockSpec((block_q, d), lambda q, k: (q, 0)),         # Q rows (resident)
                pl.BlockSpec((block_k, d), lambda q, k: (k, 0)),         # K rows (streamed)
                pl.BlockSpec((block_q, d),
                             lambda q, k: ((q + n_shift) % num_qb, 0)),  # positives (resident)
            ],
            out_specs=pl.BlockSpec((block_q, 1), lambda q, k: (q, 0)),
            scratch_shapes=[pltpu.VMEM((block_q, acc_cols), jnp.float32)]),
        compiler_params=pltpu.CompilerParams(
            dimension_semantics=("parallel", "arbitrary"),
            vmem_limit_bytes=vmem_limit),
    )(zn, zn, zn)

    losses = losses[:, 0]
    if pad:
        losses = jnp.concatenate([losses[:n], losses[n_pad:n_pad + n]])
    return jnp.sum(losses) / (2.0 * n)


def _ntxent_reference(z_i, z_j, temperature=1.0):
    """Pure-JAX reference mirroring the PyTorch forward, for validation."""
    n = z_i.shape[0]
    z = jnp.concatenate([z_i, z_j], axis=0).astype(jnp.float32)
    norm = jnp.maximum(jnp.linalg.norm(z, axis=1, keepdims=True), 1e-8)
    zn = z / norm
    sim = zn @ zn.T
    sim_ij = jnp.diagonal(sim, offset=n)
    sim_ji = jnp.diagonal(sim, offset=-n)
    positives = jnp.concatenate([sim_ij, sim_ji], axis=0)
    mask = 1.0 - jnp.eye(2 * n, dtype=jnp.float32)
    numerator = jnp.exp(positives / temperature)
    denominator = jnp.sum(mask * jnp.exp(sim / temperature), axis=1)
    all_losses = -jnp.log(numerator / denominator)
    return jnp.sum(all_losses) / (2 * n)


if __name__ == "__main__":
    key = jax.random.PRNGKey(0)
    k1, k2, k3, k4, k5, k6 = jax.random.split(key, 6)

    # Case 1: small, module-consistent shapes (batch N=8, feature D=32).
    N, D = 8, 32
    z_i = jax.random.normal(k1, (N, D), dtype=jnp.float32)
    z_j = jax.random.normal(k2, (N, D), dtype=jnp.float32)
    loss = jax.block_until_ready(ntxent_loss(z_i, z_j, temperature=1.0))
    ref = jax.block_until_ready(_ntxent_reference(z_i, z_j, temperature=1.0))
    assert jnp.allclose(loss, ref, rtol=1e-5, atol=1e-5), (loss, ref)

    # Case 2: small explicit tiles so the 2-D streaming grid (multiple K
    # steps, partner-block positives, non-unit temperature) is exercised.
    N2, D2 = 32, 32
    z_i2 = jax.random.normal(k3, (N2, D2), dtype=jnp.float32)
    z_j2 = jax.random.normal(k4, (N2, D2), dtype=jnp.float32)
    loss2 = jax.block_until_ready(
        ntxent_loss(z_i2, z_j2, temperature=0.5, block_q=8, block_k=16))
    ref2 = jax.block_until_ready(_ntxent_reference(z_i2, z_j2, temperature=0.5))
    assert jnp.allclose(loss2, ref2, rtol=1e-5, atol=1e-5), (loss2, ref2)

    # Case 3: ragged batch (N not a multiple of 8) exercises the zero-padding
    # + constant-correction path.
    N3, D3 = 12, 32
    z_i3 = jax.random.normal(k5, (N3, D3), dtype=jnp.float32)
    z_j3 = jax.random.normal(k6, (N3, D3), dtype=jnp.float32)
    loss3 = jax.block_until_ready(ntxent_loss(z_i3, z_j3, temperature=0.5))
    ref3 = jax.block_until_ready(_ntxent_reference(z_i3, z_j3, temperature=0.5))
    assert jnp.allclose(loss3, ref3, rtol=1e-5, atol=1e-5), (loss3, ref3)

    # Case 4: optional bf16 storage / bf16 MXU operands (looser parity).
    loss4 = jax.block_until_ready(
        ntxent_loss(z_i2, z_j2, temperature=0.5, store_bf16=True))
    assert jnp.allclose(loss4, ref2, rtol=5e-2, atol=5e-2), (loss4, ref2)

    print("KERNEL_OK")
</pallas_src>

<mosaic_0001>
module attributes {stable_mosaic.version = 11 : i64} {
  func.func @_normalize_kernel(%arg0: i32, %arg1: memref<16x32xf32, #tpu.memory_space<vmem>>, %arg2: memref<16x32xf32, #tpu.memory_space<vmem>>) attributes {dimension_semantics = [#tpu.dimension_semantics<parallel>], iteration_bounds = array<i64: 1>, scalar_prefetch = 0 : i64, scratch_operands = 0 : i64, tpu.core_type = #tpu.core_type<tc>, window_params = [{transform_indices = @transform_0, window_bounds = array<i64: 16, 32>}, {transform_indices = @transform_1, window_bounds = array<i64: 16, 32>}]} {
    %c0 = arith.constant 0 : index
    %c0_0 = arith.constant 0 : index
    %0 = vector.load %arg1[%c0, %c0_0] : memref<16x32xf32, #tpu.memory_space<vmem>>, vector<16x32xf32>
    %1 = arith.mulf %0, %0 : vector<16x32xf32>
    %cst = arith.constant dense<0.000000e+00> : vector<16xf32>
    %2 = vector.multi_reduction <add>, %1, %cst [1] : vector<16x32xf32> to vector<16xf32>
    %3 = vector.shape_cast %2 : vector<16xf32> to vector<16x1xf32>
    %cst_1 = arith.constant 1.000000e-16 : f32
    %4 = vector.broadcast %cst_1 : f32 to vector<16x1xf32>
    %5 = arith.maximumf %3, %4 : vector<16x1xf32>
    %6 = math.rsqrt %5 : vector<16x1xf32>
    %cst_2 = arith.constant 1.000000e+00 : f32
    %7 = vector.broadcast %cst_2 : f32 to vector<16x1xf32>
    %8 = arith.mulf %6, %7 : vector<16x1xf32>
    %9 = vector.broadcast %8 : vector<16x1xf32> to vector<16x32xf32>
    %10 = arith.mulf %0, %9 : vector<16x32xf32>
    %c0_3 = arith.constant 0 : index
    %c0_4 = arith.constant 0 : index
    %11 = vector.load %arg2[%c0_3, %c0_4] : memref<16x32xf32, #tpu.memory_space<vmem>>, vector<16x32xf32>
    tpu.vector_store %arg2[%c0_3, %c0_4], %10 {strides = array<i32>} : memref<16x32xf32, #tpu.memory_space<vmem>>, vector<16x32xf32>,
    return
  }
  func.func @transform_0(%arg0: i32) -> (i32, i32) {
    %c0_i32 = arith.constant 0 : i32
    %c0_i32_0 = arith.constant 0 : i32
    return %arg0, %c0_i32 : i32, i32
  }
  func.func @transform_1(%arg0: i32) -> (i32, i32) {
    %c0_i32 = arith.constant 0 : i32
    %c0_i32_0 = arith.constant 0 : i32
    return %arg0, %c0_i32 : i32, i32
  }
}

</mosaic_0001>

<llo_original>
// kernel: tpu_custom_call.1
$region0: #{tpu_custom_call.1}
  #allocation0 [shape = 'u32[]', space=smem, size = 0x4, offset = 0x4, fixed_abs, tag = 'smem constant byte address 0x4 - core index']
  #allocation1 [shape = 'u32[144,128]{1,0:T(1,128)}', space=vmem, size = 0x12000, scoped, tag = 'internal scratch']
  %s0 = inlined_call_operand.hbm [shape: f32[16,32], index: 0, kind: input, shape index: {}]
  %s1 = inlined_call_operand.hbm [shape: f32[16,32], index: 1, kind: output, shape index: {}]
  %s2 = sld [smem:[#allocation0]]
  $region18: #{tpu_custom_call.1} parent=0
    _
  %s4 = ssub.s32 1, %s2
  %s5 = scalar_select 0, %s4, %s2
  $region1: #{tpu_custom_call.1} parent=0
    #allocation2 [shape = 'u8[8192]{0}', space=vmem, size = 0x2000, scoped, tag = 'input window, operand 0, single buffered']
    #allocation3 [shape = 's32[1]{0}', space=sflag, size = 0x4, scoped, tag = 'scoped memory for tpu_custom_call.1']
    #allocation4 [shape = 's32[1]{0}', space=sflag, size = 0x4, scoped, tag = 'scoped memory for tpu_custom_call.1']
    #allocation5 [shape = 'u8[8192]{0}', space=vmem, size = 0x2000, scoped, tag = 'output window, operand 0, single buffered']
    %6 = vsyncpa [#allocation3], 0
    %7 = vsyncpa [#allocation4], 0
    // Predicated region
    $region2: #{tpu_custom_call.1} parent=1 // pred_check
      _
    $region3: #{tpu_custom_call.1} parent=1 // pred_check_branch
      %9 = sbr.rel (0) target = $region5
    $region4: #{tpu_custom_call.1} parent=1 // pred_region
      %s11 = ssub.s32 256, 256
      %12 = vsyncadd [#allocation3], %s11
      %s13 = sshll.u32 [#allocation2], 4
      %s14 = int_to_ptr.vmem [resolvable:$true] %s13
      %19 = dma.hbm_to_vmem [thread:$0]  %s0, 256, %s14, [#allocation3], 128, 128, 8
    $region5: #{tpu_custom_call.1} parent=1 // pred_fallthru
      _
    // Predicated region
    $region6: #{tpu_custom_call.1} parent=1 // pred_check
      _
    $region7: #{tpu_custom_call.1} parent=1 // pred_check_branch
      %21 = sbr.rel (0) target = $region9
    $region8: #{tpu_custom_call.1} parent=1 // pred_region
      %22 = dma.done [#allocation3], 256
    $region9: #{tpu_custom_call.1} parent=1 // pred_fallthru
      _
    %v23 = vld [vmem:[#allocation2] sm:$0xff]
    %v24 = vld [vmem:[#allocation2 + $0x8] sm:$0xff]
    %v25 = vmul.f32 %v23, %v23
    %v26 = vmul.f32 %v24, %v24
    %vm27 = vcmask 261120
    %v28 = vsel %vm27, %v25, 0.0
    %29 = vadd.xlane.f32.xlu0 %v28
    %v30 = vpop.xlane.xlu0 %29
    %v31 = vsel %vm27, %v26, 0.0
    %32 = vadd.xlane.f32.xlu0 %v31
    %v33 = vpop.xlane.xlu0 %32
    %v34 = vmax.f32 %v30, 1e-16
    %v35 = vmax.f32 %v33, 1e-16
    %v36 = vrsqrt.pop %v34
    %v37 = vrsqrt.pop %v35
    %v38 = vmul.f32 %v23, %v36
    %v39 = vmul.f32 %v24, %v37
    %40 = vst.msk [vmem:[#allocation5] sm:$0xff] %vm27, %v38
    %41 = vst.msk [vmem:[#allocation5 + $0x8] sm:$0xff] %vm27, %v39
    // Predicated region
    $region10: #{tpu_custom_call.1} parent=1 // pred_check
      _
    $region11: #{tpu_custom_call.1} parent=1 // pred_check_branch
      %43 = sbr.rel (0) target = $region13
    $region12: #{tpu_custom_call.1} parent=1 // pred_region
      %s45 = ssub.s32 256, 256
      %46 = vsyncadd [#allocation4], %s45
      %s47 = sshll.u32 [#allocation5], 4
      %s48 = int_to_ptr.vmem [resolvable:$true] %s47
      %53 = dma.vmem_to_hbm [thread:$0]  %s48, 256, %s1, [#allocation4], 128, 128, 8
    $region13: #{tpu_custom_call.1} parent=1 // pred_fallthru
      _
    // Predicated region
    $region14: #{tpu_custom_call.1} parent=1 // pred_check
      _
    $region15: #{tpu_custom_call.1} parent=1 // pred_check_branch
      %55 = sbr.rel (0) target = $region17
    $region16: #{tpu_custom_call.1} parent=1 // pred_region
      %56 = dma.done [#allocation4], 256
    $region17: #{tpu_custom_call.1} parent=1 // pred_fallthru
      _
    %57 = vsyncpa [#allocation3], 1
    %58 = vsyncpa [#allocation4], 1

</llo_original>
